<compile_context>
chip_gen: v5e
topology: v5e:2x2
jax: 0.10.0
libtpu: 0.0.40
codegen_flags: <defaults>
</compile_context>

<pallas_src>
import functools

import jax
import jax.numpy as jnp
import numpy as np
from jax import lax
from jax.experimental import pallas as pl
from jax.experimental.pallas import tpu as pltpu


def _hybrid_loss_kernel(y_ref, gt_ref, out_ref, *, row_w, spatial_tv,
                        spectral_tv):
    """Partial sums for one (batch, row-tile) block.

    y_ref, gt_ref : VMEM tiles of shape (1, C, L), L = t_h * W (lane-dense).
    out_ref       : VMEM tile (1, 1, 8, 128); lanes 0..3 of sublane 0 hold
                    [l1_sum, h_tv_sum, w_tv_sum, c_tv_sum] for this block.
    """
    _, C, L = y_ref.shape
    W = row_w

    y = y_ref[0].astype(jnp.float32)   # (C, L)
    g = gt_ref[0].astype(jnp.float32)  # (C, L)

    # L1 fidelity partial sum (mean is applied in the wrapper).
    l1 = jnp.sum(jnp.abs(y - g))

    h_tv = jnp.float32(0.0)
    w_tv = jnp.float32(0.0)
    c_tv = jnp.float32(0.0)

    if spatial_tv:
        # One lane-index iota shared by both spatial-TV masks.
        lane = lax.broadcasted_iota(jnp.int32, (1, L), 1)

        if L > W:
            # H-direction TV: full-shape XLU lane-rotate + mask.  pltpu.roll
            # follows the np.roll convention, so (y - roll(y, W))[i] =
            # y[i] - y[i - W]; lanes i < W (the wrap pairs against the last
            # image row of this tile) are masked out.  Every operand stays a
            # lane-aligned (C, L) array: no relayout copies, no subtraction of
            # two large sums (no cancellation error).
            dh = y - pltpu.roll(y, W, 1)
            dh = jnp.where(lane >= W, dh, 0.0)
            h_tv = jnp.sum(dh * dh)

        if W > 1:
            # W-direction TV: adjacent-lane cyclic difference, masking lanes
            # whose left neighbour belongs to a different image row (col 0).
            dw = y - pltpu.roll(y, 1, 1)
            if (W & (W - 1)) == 0:           # power-of-two W: cheap AND mask
                col = lane & (W - 1)
            else:
                col = lane % W
            dw = jnp.where(col != 0, dw, 0.0)
            w_tv = jnp.sum(dw * dw)

    if spectral_tv and C > 1:
        # Spectral (channel) TV; C is the sublane axis of this tile.
        dc = y[1:, :] - y[:-1, :]
        c_tv = jnp.sum(dc * dc)

    # Pack the scalars into lanes 0..3 of a full (8, 128) tile so the output
    # store is an unmasked, lane-dense vreg write.
    lane8 = lax.broadcasted_iota(jnp.int32, (8, 128), 1)
    tile = jnp.where(lane8 == 0, l1, 0.0)
    if spatial_tv:
        tile = tile + jnp.where(lane8 == 1, h_tv, 0.0)
        tile = tile + jnp.where(lane8 == 2, w_tv, 0.0)
    if spectral_tv:
        tile = tile + jnp.where(lane8 == 3, c_tv, 0.0)
    out_ref[0, 0] = tile


def _choose_rows_per_tile(B, C, H, W, *, target_bytes=2 << 20,
                          hard_cap_bytes=6 << 20, min_grid_steps=8):
    """Rows per row-tile.

    Constraints / heuristics:
      * t divides H and t*W is a multiple of 128 (or t == H), so the lane axis
        of every block is dense or full-extent.
      * Sized on the f32 working set (kernel casts to f32 and keeps a few
        (C, L) f32 temporaries), targeting ~2 MiB per input tile: amortizes
        the per-step overhead while keeping the double-buffered footprint far
        under v7x's 64 MiB VMEM (and v5e/v6e limits) with the 48 MiB scoped
        limit set below.
      * Among fitting candidates, prefer ones that keep >= min_grid_steps grid
        steps so v7x's two TensorCores both stay busy.
      * Returns None when nothing fits under the hard cap; the caller then
        falls back to the fused-XLA path instead of risking a VMEM blow-up.
    """
    bytes_per_row_f32 = C * W * 4
    cands = [t for t in range(1, H + 1)
             if H % t == 0 and (t == H or (t * W) % 128 == 0)]
    fitting = [t for t in cands if t * bytes_per_row_f32 <= target_bytes]
    if not fitting:
        t_min = min(cands)
        if t_min * bytes_per_row_f32 <= hard_cap_bytes:
            return t_min
        return None
    preferred = [t for t in fitting if B * (H // t) >= min_grid_steps]
    return max(preferred) if preferred else max(fitting)


def _hybrid_loss_ref(y, gt, *, spatial_tv=False, spectral_tv=False):
    """Pure-JAX reference (also the small-problem / fallback path).

    Matches the PyTorch module exactly, including inf/nan behaviour for
    degenerate shapes (C==1 with spectral TV, H==1 or W==1 with spatial TV).
    """
    B, C, H, W = y.shape
    y = y.astype(jnp.float32)
    gt = gt.astype(jnp.float32)
    total = jnp.mean(jnp.abs(y - gt))
    if spatial_tv:
        h_tv = jnp.sum((y[:, :, 1:, :] - y[:, :, :-1, :]) ** 2)
        w_tv = jnp.sum((y[:, :, :, 1:] - y[:, :, :, :-1]) ** 2)
        total = total + 0.001 * (h_tv / (C * (H - 1) * W)
                                 + w_tv / (C * H * (W - 1))) / B
    if spectral_tv:
        c_tv = jnp.sum((y[:, 1:, :, :] - y[:, :-1, :, :]) ** 2)
        total = total + 0.001 * 2.0 * (c_tv / ((C - 1) * H * W)) / B
    return total


@functools.partial(
    jax.jit,
    static_argnames=("lamd", "spatial_tv", "spectral_tv", "force_pallas",
                     "tile_rows"))
def hybrid_loss(y, gt, *, lamd=0.1, spatial_tv=False, spectral_tv=False,
                force_pallas=False, tile_rows=None):
    """JAX/Pallas equivalent of HybridLoss(lamd, spatial_tv, spectral_tv)(y, gt)."""
    del lamd  # Stored by the PyTorch module, never used in forward().
    B, C, H, W = y.shape
    n_elem = B * C * H * W

    # Small-problem bypass.  Plain L1: XLA's fused reduce already sits at the
    # HBM roofline, so only use the kernel above ~1M elements.  With TV on the
    # unfused XLA path re-reads y several times, so the single-pass kernel
    # pays off much earlier.
    bypass_below = (1 << 20) if not (spatial_tv or spectral_tv) else (1 << 18)
    if not force_pallas and n_elem < bypass_below:
        return _hybrid_loss_ref(y, gt, spatial_tv=spatial_tv,
                                spectral_tv=spectral_tv)

    if (tile_rows is not None and H % tile_rows == 0
            and (tile_rows == H or (tile_rows * W) % 128 == 0)):
        t_h = tile_rows
    else:
        t_h = _choose_rows_per_tile(B, C, H, W)
    if t_h is None:
        # No lane-valid row tiling fits VMEM (awkward W / very large C):
        # stay on the fused-XLA path rather than spill or fail to compile.
        # TODO(synk): add a C-tiled grid axis (spectral-TV seam handled in the
        # wrapper like the H seam) for huge hyperspectral cubes.
        return _hybrid_loss_ref(y, gt, spatial_tv=spatial_tv,
                                spectral_tv=spectral_tv)

    n_h = H // t_h
    L = t_h * W

    kernel = functools.partial(_hybrid_loss_kernel, row_w=W,
                               spatial_tv=spatial_tv, spectral_tv=spectral_tv)

    itemsize = np.dtype(y.dtype).itemsize
    flops_per_elem = 2 + (6 if spatial_tv else 0) + (3 if spectral_tv else 0)
    cost = pl.CostEstimate(
        flops=flops_per_elem * n_elem,
        transcendentals=0,
        bytes_accessed=2 * n_elem * itemsize + B * n_h * 8 * 128 * 4)

    partial_tiles = pl.pallas_call(
        kernel,
        out_shape=jax.ShapeDtypeStruct((B, n_h, 8, 128), jnp.float32),
        grid=(B, n_h),
        in_specs=[
            pl.BlockSpec((1, C, L), lambda b, h: (b, 0, h)),
            pl.BlockSpec((1, C, L), lambda b, h: (b, 0, h)),
        ],
        out_specs=pl.BlockSpec((1, 1, 8, 128), lambda b, h: (b, h, 0, 0)),
        compiler_params=pltpu.CompilerParams(
            dimension_semantics=("parallel", "parallel"),
            vmem_limit_bytes=48 << 20),
        cost_estimate=cost,
    )(y.reshape(B, C, H * W), gt.reshape(B, C, H * W))

    p = partial_tiles[:, :, 0, :]                             # (B, n_h, 128)
    total = jnp.sum(p[..., 0]) / jnp.float32(n_elem)          # L1 mean

    if spatial_tv:
        h_tv = jnp.sum(p[..., 1])
        w_tv = jnp.sum(p[..., 2])
        if n_h > 1:
            # H-direction TV seam between adjacent row tiles (rows k*t_h - 1
            # and k*t_h for k = 1..n_h-1); tiny compared with the full image.
            top = y[:, :, t_h:H:t_h, :].astype(jnp.float32)
            bot = y[:, :, t_h - 1:H - 1:t_h, :].astype(jnp.float32)
            h_tv = h_tv + jnp.sum((top - bot) ** 2)
        count_h = jnp.float32(C * (H - 1) * W)
        count_w = jnp.float32(C * H * (W - 1))
        total = total + 0.001 * (h_tv / count_h + w_tv / count_w) / jnp.float32(B)

    if spectral_tv:
        c_tv = jnp.sum(p[..., 3])
        count_c = jnp.float32((C - 1) * H * W)
        total = total + 0.001 * 2.0 * (c_tv / count_c) / jnp.float32(B)

    return total


if __name__ == "__main__":
    key = jax.random.PRNGKey(0)
    ky, kg = jax.random.split(key)
    B, C, H, W = 2, 4, 16, 16
    y = jax.random.normal(ky, (B, C, H, W), dtype=jnp.float32)
    gt = jax.random.normal(kg, (B, C, H, W), dtype=jnp.float32)

    # Full config (L1 + spatial TV + spectral TV) through the Pallas kernel.
    out = jax.block_until_ready(
        hybrid_loss(y, gt, spatial_tv=True, spectral_tv=True,
                    force_pallas=True))
    ref = _hybrid_loss_ref(y, gt, spatial_tv=True, spectral_tv=True)
    assert np.allclose(np.asarray(out), np.asarray(ref),
                       rtol=1e-5, atol=1e-6), (float(out), float(ref))

    # Same config, but with 2 row-tiles per image to exercise the multi-tile
    # grid and the wrapper-side H-TV seam correction.
    out_t = jax.block_until_ready(
        hybrid_loss(y, gt, spatial_tv=True, spectral_tv=True,
                    force_pallas=True, tile_rows=8))
    assert np.allclose(np.asarray(out_t), np.asarray(ref),
                       rtol=1e-5, atol=1e-6), (float(out_t), float(ref))

    # Default config (plain L1) -> kernel specialized with no TV work.
    out_l1 = jax.block_until_ready(hybrid_loss(y, gt, force_pallas=True))
    ref_l1 = _hybrid_loss_ref(y, gt)
    assert np.allclose(np.asarray(out_l1), np.asarray(ref_l1),
                       rtol=1e-5, atol=1e-6), (float(out_l1), float(ref_l1))

    # Public entry point at this tiny size uses the small-problem bypass.
    out_bp = jax.block_until_ready(
        hybrid_loss(y, gt, spatial_tv=True, spectral_tv=True))
    assert np.allclose(np.asarray(out_bp), np.asarray(ref),
                       rtol=1e-5, atol=1e-6)

    print("KERNEL_OK")
</pallas_src>

<mosaic_0001>
module attributes {stable_mosaic.version = 11 : i64} {
  func.func @_hybrid_loss_kernel(%arg0: i32, %arg1: i32, %arg2: memref<1x4x256xf32, #tpu.memory_space<vmem>>, %arg3: memref<1x4x256xf32, #tpu.memory_space<vmem>>, %arg4: memref<1x1x8x128xf32, #tpu.memory_space<vmem>>) attributes {dimension_semantics = [#tpu.dimension_semantics<parallel>, #tpu.dimension_semantics<parallel>], iteration_bounds = array<i64: 2, 1>, scalar_prefetch = 0 : i64, scratch_operands = 0 : i64, tpu.core_type = #tpu.core_type<tc>, window_params = [{transform_indices = @transform_0, window_bounds = array<i64: 1, 4, 256>}, {transform_indices = @transform_1, window_bounds = array<i64: 1, 4, 256>}, {transform_indices = @transform_2, window_bounds = array<i64: 1, 1, 8, 128>}]} {
    %c0 = arith.constant 0 : index
    %c0_0 = arith.constant 0 : index
    %c0_1 = arith.constant 0 : index
    %0 = vector.load %arg2[%c0, %c0_0, %c0_1] : memref<1x4x256xf32, #tpu.memory_space<vmem>>, vector<1x4x256xf32>
    %1 = vector.shape_cast %0 : vector<1x4x256xf32> to vector<4x256xf32>
    %c0_2 = arith.constant 0 : index
    %c0_3 = arith.constant 0 : index
    %c0_4 = arith.constant 0 : index
    %2 = vector.load %arg3[%c0_2, %c0_3, %c0_4] : memref<1x4x256xf32, #tpu.memory_space<vmem>>, vector<1x4x256xf32>
    %3 = vector.shape_cast %2 : vector<1x4x256xf32> to vector<4x256xf32>
    %4 = arith.subf %1, %3 : vector<4x256xf32>
    %5 = math.absf %4 : vector<4x256xf32>
    %6 = vector.shape_cast %5 : vector<4x256xf32> to vector<1x4x256xf32>
    %cst = arith.constant dense<0.000000e+00> : vector<1xf32>
    %7 = vector.multi_reduction <add>, %6, %cst [1, 2] : vector<1x4x256xf32> to vector<1xf32>
    %8 = vector.shape_cast %7 : vector<1xf32> to vector<1x1x1xf32>
    %9 = vector.extract %8[0, 0, 0] : f32 from vector<1x1x1xf32>
    %10 = tpu.iota {dimensions = array<i32: 1>} : vector<1x256xi32>
    %c16_i32 = arith.constant 16 : i32
    %11 = tpu.dynamic_rotate %1 by %c16_i32 dim 1 : vector<4x256xf32>, i32 -> vector<4x256xf32>
    %12 = arith.subf %1, %11 : vector<4x256xf32>
    %c16_i32_5 = arith.constant 16 : i32
    %13 = vector.broadcast %c16_i32_5 : i32 to vector<1x256xi32>
    %14 = arith.cmpi sge, %10, %13 : vector<1x256xi32>
    %cst_6 = arith.constant 0.000000e+00 : f32
    %15 = vector.shape_cast %14 : vector<1x256xi1> to vector<1x256xi1>
    %16 = vector.broadcast %15 : vector<1x256xi1> to vector<4x256xi1>
    %17 = vector.broadcast %cst_6 : f32 to vector<4x256xf32>
    %18 = arith.select %16, %12, %17 : vector<4x256xi1>, vector<4x256xf32>
    %19 = arith.mulf %18, %18 : vector<4x256xf32>
    %20 = vector.shape_cast %19 : vector<4x256xf32> to vector<1x4x256xf32>
    %cst_7 = arith.constant dense<0.000000e+00> : vector<1xf32>
    %21 = vector.multi_reduction <add>, %20, %cst_7 [1, 2] : vector<1x4x256xf32> to vector<1xf32>
    %22 = vector.shape_cast %21 : vector<1xf32> to vector<1x1x1xf32>
    %23 = vector.extract %22[0, 0, 0] : f32 from vector<1x1x1xf32>
    %c1_i32 = arith.constant 1 : i32
    %24 = tpu.dynamic_rotate %1 by %c1_i32 dim 1 : vector<4x256xf32>, i32 -> vector<4x256xf32>
    %25 = arith.subf %1, %24 : vector<4x256xf32>
    %c15_i32 = arith.constant 15 : i32
    %26 = vector.broadcast %c15_i32 : i32 to vector<1x256xi32>
    %27 = arith.andi %10, %26 : vector<1x256xi32>
    %c0_i32 = arith.constant 0 : i32
    %28 = vector.broadcast %c0_i32 : i32 to vector<1x256xi32>
    %29 = arith.cmpi ne, %27, %28 : vector<1x256xi32>
    %cst_8 = arith.constant 0.000000e+00 : f32
    %30 = vector.shape_cast %29 : vector<1x256xi1> to vector<1x256xi1>
    %31 = vector.broadcast %30 : vector<1x256xi1> to vector<4x256xi1>
    %32 = vector.broadcast %cst_8 : f32 to vector<4x256xf32>
    %33 = arith.select %31, %25, %32 : vector<4x256xi1>, vector<4x256xf32>
    %34 = arith.mulf %33, %33 : vector<4x256xf32>
    %35 = vector.shape_cast %34 : vector<4x256xf32> to vector<1x4x256xf32>
    %cst_9 = arith.constant dense<0.000000e+00> : vector<1xf32>
    %36 = vector.multi_reduction <add>, %35, %cst_9 [1, 2] : vector<1x4x256xf32> to vector<1xf32>
    %37 = vector.shape_cast %36 : vector<1xf32> to vector<1x1x1xf32>
    %38 = vector.extract %37[0, 0, 0] : f32 from vector<1x1x1xf32>
    %39 = vector.extract_strided_slice %1 {offsets = [1, 0], sizes = [3, 256], strides = [1, 1]} : vector<4x256xf32> to vector<3x256xf32>
    %40 = vector.extract_strided_slice %1 {offsets = [0, 0], sizes = [3, 256], strides = [1, 1]} : vector<4x256xf32> to vector<3x256xf32>
    %41 = arith.subf %39, %40 : vector<3x256xf32>
    %42 = arith.mulf %41, %41 : vector<3x256xf32>
    %43 = vector.shape_cast %42 : vector<3x256xf32> to vector<1x3x256xf32>
    %cst_10 = arith.constant dense<0.000000e+00> : vector<1xf32>
    %44 = vector.multi_reduction <add>, %43, %cst_10 [1, 2] : vector<1x3x256xf32> to vector<1xf32>
    %45 = vector.shape_cast %44 : vector<1xf32> to vector<1x1x1xf32>
    %46 = vector.extract %45[0, 0, 0] : f32 from vector<1x1x1xf32>
    %47 = tpu.iota {dimensions = array<i32: 1>} : vector<8x128xi32>
    %c0_i32_11 = arith.constant 0 : i32
    %48 = vector.broadcast %c0_i32_11 : i32 to vector<8x128xi32>
    %49 = arith.cmpi eq, %47, %48 : vector<8x128xi32>
    %cst_12 = arith.constant 0.000000e+00 : f32
    %50 = vector.broadcast %9 : f32 to vector<8x128xf32>
    %51 = vector.broadcast %cst_12 : f32 to vector<8x128xf32>
    %52 = arith.select %49, %50, %51 : vector<8x128xi1>, vector<8x128xf32>
    %c1_i32_13 = arith.constant 1 : i32
    %53 = vector.broadcast %c1_i32_13 : i32 to vector<8x128xi32>
    %54 = arith.cmpi eq, %47, %53 : vector<8x128xi32>
    %cst_14 = arith.constant 0.000000e+00 : f32
    %55 = vector.broadcast %23 : f32 to vector<8x128xf32>
    %56 = vector.broadcast %cst_14 : f32 to vector<8x128xf32>
    %57 = arith.select %54, %55, %56 : vector<8x128xi1>, vector<8x128xf32>
    %58 = arith.addf %52, %57 : vector<8x128xf32>
    %c2_i32 = arith.constant 2 : i32
    %59 = vector.broadcast %c2_i32 : i32 to vector<8x128xi32>
    %60 = arith.cmpi eq, %47, %59 : vector<8x128xi32>
    %cst_15 = arith.constant 0.000000e+00 : f32
    %61 = vector.broadcast %38 : f32 to vector<8x128xf32>
    %62 = vector.broadcast %cst_15 : f32 to vector<8x128xf32>
    %63 = arith.select %60, %61, %62 : vector<8x128xi1>, vector<8x128xf32>
    %64 = arith.addf %58, %63 : vector<8x128xf32>
    %c3_i32 = arith.constant 3 : i32
    %65 = vector.broadcast %c3_i32 : i32 to vector<8x128xi32>
    %66 = arith.cmpi eq, %47, %65 : vector<8x128xi32>
    %cst_16 = arith.constant 0.000000e+00 : f32
    %67 = vector.broadcast %46 : f32 to vector<8x128xf32>
    %68 = vector.broadcast %cst_16 : f32 to vector<8x128xf32>
    %69 = arith.select %66, %67, %68 : vector<8x128xi1>, vector<8x128xf32>
    %70 = arith.addf %64, %69 : vector<8x128xf32>
    %c0_17 = arith.constant 0 : index
    %c0_18 = arith.constant 0 : index
    %c0_19 = arith.constant 0 : index
    %c0_20 = arith.constant 0 : index
    %71 = vector.load %arg4[%c0_17, %c0_18, %c0_19, %c0_20] : memref<1x1x8x128xf32, #tpu.memory_space<vmem>>, vector<1x1x8x128xf32>
    %72 = vector.shape_cast %71 : vector<1x1x8x128xf32> to vector<8x128xf32>
    %73 = vector.shape_cast %70 : vector<8x128xf32> to vector<1x1x8x128xf32>
    tpu.vector_store %arg4[%c0_17, %c0_18, %c0_19, %c0_20], %73 {strides = array<i32>} : memref<1x1x8x128xf32, #tpu.memory_space<vmem>>, vector<1x1x8x128xf32>,
    return
  }
  func.func @transform_0(%arg0: i32, %arg1: i32) -> (i32, i32, i32) {
    %c0_i32 = arith.constant 0 : i32
    %c0_i32_0 = arith.constant 0 : i32
    return %arg0, %c0_i32, %arg1 : i32, i32, i32
  }
  func.func @transform_1(%arg0: i32, %arg1: i32) -> (i32, i32, i32) {
    %c0_i32 = arith.constant 0 : i32
    %c0_i32_0 = arith.constant 0 : i32
    return %arg0, %c0_i32, %arg1 : i32, i32, i32
  }
  func.func @transform_2(%arg0: i32, %arg1: i32) -> (i32, i32, i32, i32) {
    %c0_i32 = arith.constant 0 : i32
    %c0_i32_0 = arith.constant 0 : i32
    %c0_i32_1 = arith.constant 0 : i32
    return %arg0, %arg1, %c0_i32, %c0_i32_0 : i32, i32, i32, i32
  }
}

</mosaic_0001>

<llo_original>
// kernel: hybrid_loss.1
$region0: #{hybrid_loss.1}
  #allocation0 [shape = 'u32[]', space=smem, size = 0x4, offset = 0x4, fixed_abs, tag = 'smem constant byte address 0x4 - core index']
  #allocation1 [shape = 'u32[72,128]{1,0:T(1,128)}', space=vmem, size = 0x9000, scoped, tag = 'internal scratch']
  %s0 = inlined_call_operand.vmem [shape: f32[2,4,256], index: 0, kind: input, shape index: {}]
  %s1 = inlined_call_operand.vmem [shape: f32[2,4,256], index: 1, kind: input, shape index: {}]
  %s2 = inlined_call_operand.vmem [shape: f32[2,1,8,128], index: 2, kind: output, shape index: {}]
  %s3 = sld [smem:[#allocation0]]
  $region41: #{hybrid_loss.1} parent=0
    _
  %s5 = ssub.s32 1, %s3
  %s6 = scalar_select 0, %s5, %s3
  loop: start=0, step=1, limit=4
  $region2: #{hybrid_loss.1} parent=0 // loop_pre_header
    _
  $region3: #{hybrid_loss.1} parent=0 // loop_header
    %s8 = sphi 0, %s12
    %p9 = scmp.ge.s32.totalorder %s8, 4
    %s15 = sphi 0, %s27
    %s16 = sphi 0, %s23
    %s17 = sphi 0, %s15
    %s18 = sphi 0, %s16
    %s19 = sphi 0, %s17
    %s20 = sphi 0, %s18
    %s32 = sphi 0, %s34
    %s35 = sphi 0, %s32
    %s36 = sphi 0, %s35
    %s52 = sphi 0, %s36
    %s60 = sphi 0, %s62
    %s63 = sphi 0, %s60
    %s64 = sphi 0, %s63
    %s80 = sphi 0, %s64
    %s88 = sphi 0, %s90
    %s91 = sphi 0, %s88
    %s92 = sphi 0, %s91
    %s108 = sphi 0, %s92
  $region4: #{hybrid_loss.1} parent=0 // loop_header_branch
    %11 = sbr.rel (%p9) target = $region8
  $region5: #{hybrid_loss.1} parent=0 // loop_body
    %s13 = ssub.s32 %s8, 1
    %s14 = ssub.s32 %s8, 2
    %s21 = sadd.s32 1, %s16
    %p22 = scmp.ge.s32.totalorder %s21, 1
    %s23 = scalar_select %p22, 0, %s21
    %s24 = sadd.s32 1, %s15
    %s25 = scalar_select %p22, %s24, %s15
    %p26 = scmp.ge.s32.totalorder %s25, 2
    %s27 = scalar_select %p26, 0, %s25
    %s28 = ssub.s32 %s15, %s27
    %s29 = ssub.s32 %s16, %s23
    %s30 = sor.u32 %s28, %s29
    %p31 = scmp.eq.s32.totalorder %s30, 0
    %s33 = sadd.s32 %s32, 1
    %s34 = scalar_select %p31, %s32, %s33
    %p37 = pneg %p31
    %p38 = scmp.eq.s32.totalorder %s8, 1
    %p39 = por %p37, %p38
    %p40 = scmp.ne.s32.totalorder %s32, %s35
    %p41 = scmp.eq.s32.totalorder %s8, 0
    %p42 = por %p40, %p41
    %p43 = scmp.ne.s32.totalorder %s32, %s35
    %p44 = scmp.eq.s32.totalorder %s13, 1
    %p45 = por %p43, %p44
    %p46 = scmp.ne.s32.totalorder %s35, %s36
    %p47 = scmp.eq.s32.totalorder %s13, 0
    %p48 = por %p46, %p47
    %p49 = scmp.ne.s32.totalorder %s35, %s36
    %p50 = scmp.eq.s32.totalorder %s14, 1
    %p51 = por %p49, %p50
    %p53 = scmp.ne.s32.totalorder %s36, %s52
    %p54 = scmp.eq.s32.totalorder %s14, 0
    %p55 = por %p53, %p54
    %s56 = ssub.s32 %s15, %s27
    %s57 = ssub.s32 %s16, %s23
    %s58 = sor.u32 %s56, %s57
    %p59 = scmp.eq.s32.totalorder %s58, 0
    %s61 = sadd.s32 %s60, 1
    %s62 = scalar_select %p59, %s60, %s61
    %p65 = pneg %p59
    %p66 = scmp.eq.s32.totalorder %s8, 1
    %p67 = por %p65, %p66
    %p68 = scmp.ne.s32.totalorder %s60, %s63
    %p69 = scmp.eq.s32.totalorder %s8, 0
    %p70 = por %p68, %p69
    %p71 = scmp.ne.s32.totalorder %s60, %s63
    %p72 = scmp.eq.s32.totalorder %s13, 1
    %p73 = por %p71, %p72
    %p74 = scmp.ne.s32.totalorder %s63, %s64
    %p75 = scmp.eq.s32.totalorder %s13, 0
    %p76 = por %p74, %p75
    %p77 = scmp.ne.s32.totalorder %s63, %s64
    %p78 = scmp.eq.s32.totalorder %s14, 1
    %p79 = por %p77, %p78
    %p81 = scmp.ne.s32.totalorder %s64, %s80
    %p82 = scmp.eq.s32.totalorder %s14, 0
    %p83 = por %p81, %p82
    %s84 = ssub.s32 %s15, %s27
    %s85 = ssub.s32 %s16, %s23
    %s86 = sor.u32 %s84, %s85
    %p87 = scmp.eq.s32.totalorder %s86, 0
    %s89 = sadd.s32 %s88, 1
    %s90 = scalar_select %p87, %s88, %s89
    %p93 = pneg %p87
    %p94 = scmp.eq.s32.totalorder %s8, 1
    %p95 = por %p93, %p94
    %p96 = scmp.ne.s32.totalorder %s88, %s91
    %p97 = scmp.eq.s32.totalorder %s8, 0
    %p98 = por %p96, %p97
    %p99 = scmp.ne.s32.totalorder %s88, %s91
    %p100 = scmp.eq.s32.totalorder %s13, 1
    %p101 = por %p99, %p100
    %p102 = scmp.ne.s32.totalorder %s91, %s92
    %p103 = scmp.eq.s32.totalorder %s13, 0
    %p104 = por %p102, %p103
    %p105 = scmp.ne.s32.totalorder %s91, %s92
    %p106 = scmp.eq.s32.totalorder %s14, 1
    %p107 = por %p105, %p106
    %p109 = scmp.ne.s32.totalorder %s92, %s108
    %p110 = scmp.eq.s32.totalorder %s14, 0
    %p111 = por %p109, %p110
    %p112 = scmp.le.s32.totalorder 1, %s8
    %p113 = scmp.lt.s32.totalorder %s8, 3
    %p114 = pnand %p112, %p113
    %p115 = pneg %p114
    // Predicated region
    $region9: #{hybrid_loss.1} parent=5 // pred_check
      _
    $region10: #{hybrid_loss.1} parent=5 // pred_check_branch
      %117 = sbr.rel (%p114) target = $region12
    $region11: #{hybrid_loss.1} parent=5 // pred_region
      %s118 = ssub.s32 %s8, 1
    $region12: #{hybrid_loss.1} parent=5 // pred_fallthru
      _
    %p119 = scmp.lt.s32.totalorder %s8, 2
    // Predicated region
    $region13: #{hybrid_loss.1} parent=5 // pred_check
      %p120 = pneg %p119
    $region14: #{hybrid_loss.1} parent=5 // pred_check_branch
      %122 = sbr.rel (%p120) target = $region16
    $region15: #{hybrid_loss.1} parent=5 // pred_region
      // Predicated region
      $region17: #{hybrid_loss.1} parent=15 // pred_check
        %p123 = pneg %p42
      $region18: #{hybrid_loss.1} parent=15 // pred_check_branch
        %125 = sbr.rel (%p123) target = $region20
      $region19: #{hybrid_loss.1} parent=15 // pred_region
        %s126 = smul.u32 2, %s16
        %p127 = scmp.lt.s32.totalorder %s15, 1
        %s128 = scalar_select %p127, %s15, 1
        %p129 = scmp.lt.s32.totalorder %s126, 1
        %s130 = scalar_select %p129, %s126, 1
        %s131 = smul.addr %s128, 2
        %s132 = sadd.s32 %s130, %s131
        %s133 = smul.addr %s132, 4
        %s134 = scalar_lea.vmem %s0, %s133
        %s135 = smul.u32 2, %s16
      $region20: #{hybrid_loss.1} parent=15 // pred_fallthru
        _
      // Predicated region
      $region21: #{hybrid_loss.1} parent=15 // pred_check
        %p136 = pneg %p70
      $region22: #{hybrid_loss.1} parent=15 // pred_check_branch
        %138 = sbr.rel (%p136) target = $region24
      $region23: #{hybrid_loss.1} parent=15 // pred_region
        %s139 = smul.u32 2, %s16
        %p140 = scmp.lt.s32.totalorder %s15, 1
        %s141 = scalar_select %p140, %s15, 1
        %p142 = scmp.lt.s32.totalorder %s139, 1
        %s143 = scalar_select %p142, %s139, 1
        %s144 = smul.addr %s141, 2
        %s145 = sadd.s32 %s143, %s144
        %s146 = smul.addr %s145, 4
        %s147 = scalar_lea.vmem %s1, %s146
        %s148 = smul.u32 2, %s16
      $region24: #{hybrid_loss.1} parent=15 // pred_fallthru
        _
    $region16: #{hybrid_loss.1} parent=5 // pred_fallthru
      _
    %p149 = scmp.le.s32.totalorder 1, %s8
    %p150 = scmp.lt.s32.totalorder %s8, 3
    %p151 = pnand %p149, %p150
    %p152 = pneg %p151
    // Predicated region
    $region25: #{hybrid_loss.1} parent=5 // pred_check
      _
    $region26: #{hybrid_loss.1} parent=5 // pred_check_branch
      %154 = sbr.rel (%p151) target = $region28
    $region27: #{hybrid_loss.1} parent=5 // pred_region
      %s155 = ssub.s32 %s8, 1
      %s156 = smul.u32 2, %s18
      %p157 = scmp.lt.s32.totalorder %s17, 1
      %s158 = scalar_select %p157, %s17, 1
      %p159 = scmp.lt.s32.totalorder %s156, 1
      %s160 = scalar_select %p159, %s156, 1
      %s161 = smul.addr %s158, 2
      %s162 = sadd.s32 %s160, %s161
      %s163 = smul.addr %s162, 4
      %s164 = scalar_lea.vmem %s0, %s163
      %p165 = pneg %p48
      %p166 = pneg %p45
      %s167 = smul.u32 2, %s18
      %p168 = scmp.lt.s32.totalorder %s17, 1
      %s169 = scalar_select %p168, %s17, 1
      %p170 = scmp.lt.s32.totalorder %s167, 1
      %s171 = scalar_select %p170, %s167, 1
      %s172 = smul.addr %s169, 2
      %s173 = sadd.s32 %s171, %s172
      %s174 = smul.addr %s173, 4
      %s175 = scalar_lea.vmem %s1, %s174
      %p176 = pneg %p76
      %p177 = pneg %p73
      %p178 = pneg %p104
      %p179 = pneg %p101
      %p180 = scmp.lt.s32.totalorder %s17, 1
      %s181 = scalar_select %p180, %s17, 1
      %p182 = scmp.lt.s32.totalorder %s18, 0
      %s183 = scalar_select %p182, %s18, 0
      %s184 = sadd.s32 %s183, %s181
      %s185 = smul.addr %s184, 8
      %s186 = scalar_lea.vmem %s2, %s185
      %s187 = smul.u32 2, %s18
      %p188 = scmp.lt.s32.totalorder %s17, 1
      %s189 = scalar_select %p188, %s17, 1
      %p190 = scmp.lt.s32.totalorder %s187, 1
      %s191 = scalar_select %p190, %s187, 1
      %s192 = smul.addr %s189, 2
      %s193 = sadd.s32 %s191, %s192
      %s194 = smul.addr %s193, 4
      %s195 = scalar_lea.vmem %s0, %s194
      %s196 = smul.u32 2, %s18
      %s197 = smul.u32 2, %s18
      %p198 = scmp.lt.s32.totalorder %s17, 1
      %s199 = scalar_select %p198, %s17, 1
      %p200 = scmp.lt.s32.totalorder %s197, 1
      %s201 = scalar_select %p200, %s197, 1
      %s202 = smul.addr %s199, 2
      %s203 = sadd.s32 %s201, %s202
      %s204 = smul.addr %s203, 4
      %s205 = scalar_lea.vmem %s1, %s204
      %s206 = smul.u32 2, %s18
      %p207 = scmp.lt.s32.totalorder %s17, 1
      %s208 = scalar_select %p207, %s17, 1
      %p209 = scmp.lt.s32.totalorder %s18, 0
      %s210 = scalar_select %p209, %s18, 0
      %s211 = sadd.s32 %s210, %s208
      %s212 = smul.addr %s211, 8
      %s213 = scalar_lea.vmem %s2, %s212
      %v214 = vld [vmem:[%s195] sm:$0xff]
      %v215 = vld [vmem:[%s205] sm:$0xff]
      %v216 = vsub.f32 %v214, %v215
      %v217 = vand.u32 2147483647, %v216
      %219 = vst [vmem:[#allocation1] ss:$2 sm:$0xff] %v217
      %v220 = vld.sshfl [vmem:[#allocation1] sm:$0xff pattern:$0x75316420]
      %v221 = vld.sshfl [vmem:[#allocation1 + $0x8] sm:$0xff pattern:$0x75316420]
      %vm224 = vcmask 1043456
      %v225 = vsel %vm224, %v220, 0.0
      %v226 = vsel %vm224, %v221, 0.0
      %v227 = vadd.f32 %v225, %v226
      %228 = vadd.xlane.f32.xlu0 %v227
      %v229 = vpop.xlane.xlu0 %228
      %v230 = vrot.slane %v229, 4
      %v231 = vadd.f32 %v229, %v230
      %v232 = vrot.slane %v231, 2
      %v233 = vadd.f32 %v231, %v232
      %v234 = vrot.slane %v233, 1
      %v235 = vadd.f32 %v233, %v234
      %s236 = vtos %v235
      %v237 = vlaneseq
      %v238 = vand.u32 %v237, 127
      %v239 = vadd.s32 %v238, 128
      %241 = vst [vmem:[#allocation1] ss:$2 sm:$0xff] %v214
      %v242 = vld.sshfl [vmem:[#allocation1] sm:$0xff pattern:$0x75316420]
      %v243 = vld.sshfl [vmem:[#allocation1 + $0x8] sm:$0xff pattern:$0x75316420]
      %246 = vrot.lane.b32.xlu0 %v242, 16
      %v247 = vpop.permute.xlu0 %246
      %248 = vrot.lane.b32.xlu0 %v243, 16
      %v249 = vpop.permute.xlu0 %248
      %vm250 = vcmp.lt.s32.totalorder %v238, 16
      %v251 = vsel %vm250, %v247, %v249
      %v252 = vsel %vm250, %v249, %v247
      %v255 = vrot.slane %v251, 4
      %v256 = vsel %vm224, %v252, %v255
      %v258 = vsub.f32 %v214, %v256
      %vm259 = vcmp.ge.s32.totalorder %v238, 16
      %vm260 = vcmp.ge.s32.totalorder %v239, 16
      %v261 = vsel %vm259, 1, 0
      %v262 = vsel %vm260, 1, 0
      %vm263 = vcmp.eq.s32.totalorder %v261, 1
      %vm264 = vcmp.eq.s32.totalorder %v262, 1
      %266 = vst [vmem:[#allocation1] ss:$2 sm:$0xff] %v258
      %v267 = vld.sshfl [vmem:[#allocation1] sm:$0xff pattern:$0x75316420]
      %v268 = vld.sshfl [vmem:[#allocation1 + $0x8] sm:$0xff pattern:$0x75316420]
      %v271 = vsel %vm263, %v267, 0.0
      %v272 = vsel %vm264, %v268, 0.0
      %v273 = vmul.f32 %v271, %v271
      %v274 = vmul.f32 %v272, %v272
      %v275 = vsel %vm224, %v273, 0.0
      %v276 = vsel %vm224, %v274, 0.0
      %v277 = vadd.f32 %v275, %v276
      %278 = vadd.xlane.f32.xlu0 %v277
      %v279 = vpop.xlane.xlu0 %278
      %v280 = vrot.slane %v279, 4
      %v281 = vadd.f32 %v279, %v280
      %v282 = vrot.slane %v281, 2
      %v283 = vadd.f32 %v281, %v282
      %v284 = vrot.slane %v283, 1
      %v285 = vadd.f32 %v283, %v284
      %s286 = vtos %v285
      %287 = vst [vmem:[#allocation1] ss:$2 sm:$0xff] %v214
      %v288 = vld.sshfl [vmem:[#allocation1] sm:$0xff pattern:$0x75316420]
      %v289 = vld.sshfl [vmem:[#allocation1 + $0x8] sm:$0xff pattern:$0x75316420]
      %292 = vrot.lane.b32.xlu0 %v288, 1
      %v293 = vpop.permute.xlu0 %292
      %294 = vrot.lane.b32.xlu0 %v289, 1
      %v295 = vpop.permute.xlu0 %294
      %vm296 = vcmp.lt.s32.totalorder %v238, 1
      %v297 = vsel %vm296, %v293, %v295
      %v298 = vsel %vm296, %v295, %v293
      %v301 = vrot.slane %v297, 4
      %v302 = vsel %vm224, %v298, %v301
      %v304 = vsub.f32 %v214, %v302
      %v305 = vand.u32 %v238, 15
      %v306 = vand.u32 %v239, 15
      %vm307 = vcmp.ne.s32.totalorder %v305, 0
      %vm308 = vcmp.ne.s32.totalorder %v306, 0
      %v309 = vsel %vm307, 1, 0
      %v310 = vsel %vm308, 1, 0
      %vm311 = vcmp.eq.s32.totalorder %v309, 1
      %vm312 = vcmp.eq.s32.totalorder %v310, 1
      %314 = vst [vmem:[#allocation1] ss:$2 sm:$0xff] %v304
      %v315 = vld.sshfl [vmem:[#allocation1] sm:$0xff pattern:$0x75316420]
      %v316 = vld.sshfl [vmem:[#allocation1 + $0x8] sm:$0xff pattern:$0x75316420]
      %v319 = vsel %vm311, %v315, 0.0
      %v320 = vsel %vm312, %v316, 0.0
      %v321 = vmul.f32 %v319, %v319
      %v322 = vmul.f32 %v320, %v320
      %v323 = vsel %vm224, %v321, 0.0
      %v324 = vsel %vm224, %v322, 0.0
      %v325 = vadd.f32 %v323, %v324
      %326 = vadd.xlane.f32.xlu0 %v325
      %v327 = vpop.xlane.xlu0 %326
      %v328 = vrot.slane %v327, 4
      %v329 = vadd.f32 %v327, %v328
      %v330 = vrot.slane %v329, 2
      %v331 = vadd.f32 %v329, %v330
      %v332 = vrot.slane %v331, 1
      %v333 = vadd.f32 %v331, %v332
      %s334 = vtos %v333
      %v335 = vrot.slane %v214, 7
      %v337 = vsub.f32 %v214, %v335
      %v338 = vmul.f32 %v337, %v337
      %340 = vst [vmem:[#allocation1] ss:$2 sm:$0xff] %v338
      %v341 = vld.sshfl [vmem:[#allocation1] sm:$0xff pattern:$0x75316420]
      %v342 = vld.sshfl [vmem:[#allocation1 + $0x8] sm:$0xff pattern:$0x75316420]
      %v343 = vrot.slane %v341, 1
      %v344 = vrot.slane %v342, 1
      %vm347 = vcmask 1042432
      %v348 = vsel %vm347, %v343, 0.0
      %v349 = vsel %vm347, %v344, 0.0
      %v350 = vadd.f32 %v348, %v349
      %351 = vadd.xlane.f32.xlu0 %v350
      %v352 = vpop.xlane.xlu0 %351
      %v353 = vrot.slane %v352, 4
      %v354 = vadd.f32 %v352, %v353
      %v355 = vrot.slane %v354, 2
      %v356 = vadd.f32 %v354, %v355
      %v357 = vrot.slane %v356, 1
      %v358 = vadd.f32 %v356, %v357
      %s359 = vtos %v358
      %vm360 = vcmp.eq.s32.totalorder %v238, 0
      %v361 = vstv %s236
      %v362 = vsel %vm360, %v361, 0.0
      %vm363 = vcmp.eq.s32.totalorder %v238, 1
      %v364 = vstv %s286
      %v365 = vsel %vm363, %v364, 0.0
      %v366 = vadd.f32 %v362, %v365
      %vm367 = vcmp.eq.s32.totalorder %v238, 2
      %v368 = vstv %s334
      %v369 = vsel %vm367, %v368, 0.0
      %v370 = vadd.f32 %v366, %v369
      %vm371 = vcmp.eq.s32.totalorder %v238, 3
      %v372 = vstv %s359
      %v373 = vsel %vm371, %v372, 0.0
      %v374 = vadd.f32 %v370, %v373
      %375 = vst [vmem:[%s213] sm:$0xff] %v374
      %p376 = scmp.lt.s32.totalorder %s17, 1
      %s377 = scalar_select %p376, %s17, 1
      %p378 = scmp.lt.s32.totalorder %s18, 0
      %s379 = scalar_select %p378, %s18, 0
      %s380 = sadd.s32 %s379, %s377
      %s381 = smul.addr %s380, 8
      %s382 = scalar_lea.vmem %s2, %s381
      // Predicated region
      $region29: #{hybrid_loss.1} parent=27 // pred_check
        %p383 = pneg %p101
      $region30: #{hybrid_loss.1} parent=27 // pred_check_branch
        %385 = sbr.rel (%p383) target = $region32
      $region31: #{hybrid_loss.1} parent=27 // pred_region
        _
      $region32: #{hybrid_loss.1} parent=27 // pred_fallthru
        _
    $region28: #{hybrid_loss.1} parent=5 // pred_fallthru
      _
    %p386 = scmp.le.s32.totalorder 2, %s8
    // Predicated region
    $region33: #{hybrid_loss.1} parent=5 // pred_check
      %p387 = pneg %p386
    $region34: #{hybrid_loss.1} parent=5 // pred_check_branch
      %389 = sbr.rel (%p387) target = $region36
    $region35: #{hybrid_loss.1} parent=5 // pred_region
      %s390 = ssub.s32 %s8, 2
      // Predicated region
      $region37: #{hybrid_loss.1} parent=35 // pred_check
        %p391 = pneg %p107
      $region38: #{hybrid_loss.1} parent=35 // pred_check_branch
        %393 = sbr.rel (%p391) target = $region40
      $region39: #{hybrid_loss.1} parent=35 // pred_region
        %p394 = scmp.lt.s32.totalorder %s19, 1
        %s395 = scalar_select %p394, %s19, 1
        %p396 = scmp.lt.s32.totalorder %s20, 0
        %s397 = scalar_select %p396, %s20, 0
        %s398 = sadd.s32 %s397, %s395
        %s399 = smul.addr %s398, 8
        %s400 = scalar_lea.vmem %s2, %s399
      $region40: #{hybrid_loss.1} parent=35 // pred_fallthru
        _
    $region36: #{hybrid_loss.1} parent=5 // pred_fallthru
      _
  $region6: #{hybrid_loss.1} parent=0 // loop_footer
    %s12 = sadd.s32 1, %s8
  $region7: #{hybrid_loss.1} parent=0 // loop_footer_branch
    %7 = sbr.rel target = $region3
  $region8: #{hybrid_loss.1} parent=0 // loop_exit
    _

</llo_original>
